<compile_context>
chip_gen: v7x
topology: tpu7x:2x2x1
jax: 0.10.0
libtpu: 0.0.40
codegen_flags: <defaults>
</compile_context>

<pallas_src>
import functools
import math

import numpy as np
import jax
import jax.numpy as jnp
from jax import lax
from jax.experimental import pallas as pl
from jax.experimental.pallas import tpu as pltpu


# ---------------------------------------------------------------------------
# Kernel
# ---------------------------------------------------------------------------
def _echr_head_kernel(num_labels, seq_len, has_tail,
                      qk_ref, x_ref, wf_ref, bf_ref,
                      probs_ref, attn_ref,
                      m_ref, l_ref, acc_ref):
    """Grid = (B docs ['parallel'], nt S-tiles ['arbitrary']).

    Streaming attention-pooling with online (flash-style) softmax; the folded
    (E, C) classifier + label softmax/sigmoid run once per document at the last
    S-tile.  No E x E matrices ever enter the kernel.
    """
    f32 = jnp.float32
    j = pl.program_id(1)
    nt = pl.num_programs(1)

    @pl.when(j == 0)
    def _():
        m_ref[...] = jnp.full(m_ref.shape, -jnp.inf, f32)
        l_ref[...] = jnp.zeros(l_ref.shape, f32)
        acc_ref[...] = jnp.zeros(acc_ref.shape, f32)

    x = x_ref[0]                                   # (block_s, E) current tile
    block_s = x.shape[0]

    if has_tail:
        # Global token positions of this tile; mask rows past the true sequence
        # length (the padded region of a partial block is unspecified memory).
        base = j * block_s
        row_valid = (base + lax.broadcasted_iota(jnp.int32, (block_s, 1), 0)) < seq_len
        col_valid = (base + lax.broadcasted_iota(jnp.int32, (1, block_s), 1)) < seq_len
        x = jnp.where(row_valid, x, jnp.zeros_like(x))

    # Scores for this tile: contract the E (lane) dims of (1,E) and (block_s,E)
    # -> (1, block_s).  M=1 orientation, no physical transpose of x.
    s = lax.dot_general(qk_ref[...], x,
                        dimension_numbers=(((1,), (1,)), ((), ())),
                        preferred_element_type=f32)

    if has_tail:
        s = jnp.where(col_valid, s, jnp.float32(-1e30))   # exp() -> exactly 0

    # Stash raw scores into row j of the resident attention-weights buffer
    # (normalized exactly at the last grid step for this document).
    attn_ref[:, pl.ds(j, 1), :] = s.reshape(1, 1, block_s)

    # Online-softmax accumulation of pooled = attn @ x.
    m_old = m_ref[...]
    m_new = jnp.maximum(m_old, jnp.max(s, axis=-1, keepdims=True))
    alpha = jnp.exp(m_old - m_new)
    p = jnp.exp(s - m_new)                                  # (1, block_s)
    l_ref[...] = alpha * l_ref[...] + jnp.sum(p, axis=-1, keepdims=True)
    acc_ref[...] = alpha * acc_ref[...] + jnp.dot(
        p.astype(x.dtype), x, preferred_element_type=f32)  # (1, E)
    m_ref[...] = m_new

    @pl.when(j == nt - 1)
    def _():
        inv_l = pl.reciprocal(l_ref[...])                   # exact (not approx)

        # Exact softmax over the resident raw-score buffer -> attention weights.
        attn_ref[...] = (jnp.exp(attn_ref[...] - m_ref[...].reshape(1, 1, 1))
                         * inv_l.reshape(1, 1, 1))

        pooled = acc_ref[...] * inv_l                       # (1, E) == attn @ x

        # Folded epilogue:  logits = pooled @ (Wv^T Wo^T Wc^T) + b_fold   (f32)
        logits = jnp.dot(pooled, wf_ref[...],
                         preferred_element_type=f32) + bf_ref[...]   # (1, C)

        if num_labels > 2:
            mx = jnp.max(logits, axis=-1, keepdims=True)
            e = jnp.exp(logits - mx)
            probs = e * pl.reciprocal(jnp.sum(e, axis=-1, keepdims=True))
        else:  # num_labels == 2 -> single-logit sigmoid
            probs = 1.0 / (1.0 + jnp.exp(-logits))
        probs_ref[...] = probs.reshape(probs_ref.shape).astype(probs_ref.dtype)


# ---------------------------------------------------------------------------
# Wrapper helpers
# ---------------------------------------------------------------------------
def _round_up(x, m):
    return -(-x // m) * m


def _vmem_limit_bytes():
    """Chip-aware scoped-VMEM limit: ~48 MiB on v7x (64 MiB phys), ~96 MiB on v5e/v6e."""
    default = 48 * 1024 * 1024
    try:
        cap = int(pltpu.get_tpu_info().vmem_capacity_bytes)
        if cap > 0:
            return int(min((cap * 3) // 4, 96 * 1024 * 1024))
    except Exception:
        pass
    return default


def _sublane_pack(itemsize):
    return {1: 32, 2: 16}.get(itemsize, 8)


def _pick_block_s(S, E, itemsize, vmem_limit, target=2048):
    """Largest VMEM-budgeted S-tile (pref. multiple of 128, packed-dtype aligned)."""
    pack = _sublane_pack(itemsize)
    # Reserve: resident attention buffer (~4*S bytes) + constants/scratch headroom.
    reserve = 4 * S + (4 << 20)
    budget = vmem_limit - reserve
    max_rows = max(budget // (2 * E * itemsize), pack)      # double-buffered x tile
    bs = max(min(target, max_rows), pack)
    if bs >= 128:
        bs -= bs % 128
    else:
        bs -= bs % pack
    # Whole (padded) sequence in one tile if it fits the budget.
    s_one = _round_up(S, 128 if S > 128 else pack)
    if s_one <= bs:
        bs = s_one
    return int(bs)


def _fold_params(params, num_labels, E, num_heads):
    """Fold every linear layer into one (1,E) score vector and one (E,C)+bias map."""
    f32 = jnp.float32
    out_dim = num_labels if num_labels > 2 else 1
    wq, wk, wv = jnp.split(params["in_proj_w"].astype(f32), 3, axis=0)
    bq, bk, bv = jnp.split(params["in_proj_b"].astype(f32), 3)
    del bk  # constant score shift -> cancels exactly in softmax
    wo = params["out_proj_w"].astype(f32)
    bo = params["out_proj_b"].astype(f32)
    wc = params["cls_w"].astype(f32)
    bc = params["cls_b"].astype(f32)

    head_dim = E // num_heads
    scale = 1.0 / math.sqrt(head_dim)
    q = jnp.ones((1, E), f32) @ wq.T + bq                    # input-independent query
    qk = (q @ wk) * scale                                    # (1, E)

    # logits = pooled @ (Wv^T Wo^T Wc^T) + ((bv Wo^T + bo) Wc^T + bc)
    w_fold = wv.T @ (wo.T @ wc.T)                            # (E, C), cheap chain order
    b_fold = ((bv @ wo.T + bo) @ wc.T + bc).reshape(1, out_dim)
    return qk, w_fold, b_fold


# ---------------------------------------------------------------------------
# Public entry points
# ---------------------------------------------------------------------------
def legal_bert_echr_head_batch(inputs, params, num_labels, num_heads=1, *,
                               block_s=None):
    """Batched extension: inputs (B, S, E) -> probs (B, C), attn (B, S).

    The leading document axis is a 'parallel' grid axis so megacore (v7x) shards
    documents across both TensorCores.
    """
    # TODO(synk): multi-head (>1) head-reshape path not implemented; module default is num_heads=1.
    assert num_heads == 1, "only num_heads=1 (the module default) is implemented"
    assert inputs.ndim == 3
    B, S, E = inputs.shape
    out_dim = num_labels if num_labels > 2 else 1
    compute_dtype = inputs.dtype
    itemsize = jnp.dtype(compute_dtype).itemsize
    pack = _sublane_pack(itemsize)

    vmem_limit = _vmem_limit_bytes()
    if block_s is None:
        block_s = _pick_block_s(S, E, itemsize, vmem_limit)
    assert block_s > 0 and block_s % pack == 0, \
        f"block_s={block_s} must be a positive multiple of {pack} for this dtype"

    nt = pl.cdiv(S, block_s)
    has_tail = (nt * block_s != S)

    qk, w_fold, b_fold = _fold_params(params, num_labels, E, num_heads)
    qk = qk.astype(compute_dtype)            # MXU-native with bf16 activations
    w_fold = w_fold.astype(jnp.float32)      # tiny (E, C): keep epilogue in f32
    b_fold = b_fold.astype(jnp.float32)

    kernel = functools.partial(_echr_head_kernel, num_labels, S, has_tail)

    def run(single_buffer_consts):
        const_kwargs = ({"pipeline_mode": pl.Buffered(1)}
                        if single_buffer_consts else {})
        in_specs = [
            pl.BlockSpec((1, E), lambda b, j: (0, 0), **const_kwargs),        # qk
            pl.BlockSpec((1, block_s, E), lambda b, j: (b, j, 0)),            # x stream
            pl.BlockSpec((E, out_dim), lambda b, j: (0, 0), **const_kwargs),  # W_fold
            pl.BlockSpec((1, out_dim), lambda b, j: (0, 0), **const_kwargs),  # b_fold
        ]
        out_specs = (
            pl.BlockSpec((1, 1, out_dim), lambda b, j: (b, 0, 0)),            # probs
            pl.BlockSpec((1, nt, block_s), lambda b, j: (b, 0, 0)),           # attn (resident)
        )
        return pl.pallas_call(
            kernel,
            out_shape=(jax.ShapeDtypeStruct((B, 1, out_dim), jnp.float32),
                       jax.ShapeDtypeStruct((B, nt, block_s), jnp.float32)),
            grid=(B, nt),
            in_specs=in_specs,
            out_specs=out_specs,
            scratch_shapes=[pltpu.VMEM((1, 1), jnp.float32),   # running max
                            pltpu.VMEM((1, 1), jnp.float32),   # running sum
                            pltpu.VMEM((1, E), jnp.float32)],  # running pooled acc
            compiler_params=pltpu.CompilerParams(
                dimension_semantics=("parallel", "arbitrary"),
                vmem_limit_bytes=vmem_limit),
        )(qk, inputs, w_fold, b_fold)

    try:
        probs3, attn3 = run(single_buffer_consts=True)
    except Exception:
        # Fallback if pipeline_mode=Buffered(1) is unsupported in this jax build.
        probs3, attn3 = run(single_buffer_consts=False)

    probs = probs3.reshape(B, out_dim)
    attn = attn3.reshape(B, nt * block_s)[:, :S]   # tiles contiguous; drop tail pad
    return probs, attn


def legal_bert_echr_head(inputs, params, num_labels, num_heads=1, *, block_s=None):
    """Module-semantics forward: batch of size 1 (3-D input -> inputs[0])."""
    if inputs.ndim == 3:
        inputs = inputs[0]
    probs, attn = legal_bert_echr_head_batch(inputs[None], params, num_labels,
                                             num_heads, block_s=block_s)
    return probs, attn          # (1, C) probabilities, (1, S) attention weights


# ---------------------------------------------------------------------------
# Parameters + pure-JAX reference
# ---------------------------------------------------------------------------
def init_params(key, input_size, num_labels):
    """Deterministic synthetic parameter init matching the module's shapes."""
    out_dim = num_labels if num_labels > 2 else 1
    k0, k1, k2, k3 = jax.random.split(key, 4)
    s = 1.0 / math.sqrt(input_size)
    return {
        # nn.MultiheadAttention packed in-projection: (3E, E), bias zeros (torch default)
        "in_proj_w": jax.random.uniform(k0, (3 * input_size, input_size),
                                        jnp.float32, -s, s),
        "in_proj_b": jnp.zeros((3 * input_size,), jnp.float32),
        "out_proj_w": jax.random.uniform(k1, (input_size, input_size),
                                         jnp.float32, -s, s),
        "out_proj_b": jnp.zeros((input_size,), jnp.float32),
        "cls_w": jax.random.uniform(k2, (out_dim, input_size), jnp.float32, -s, s),
        "cls_b": jax.random.uniform(k3, (out_dim,), jnp.float32, -s, s),
    }


def _reference(inputs, params, num_labels):
    """Plain-JAX f32 reference of the original (non-reassociated) forward pass."""
    x = (inputs[0] if inputs.ndim == 3 else inputs).astype(jnp.float32)
    S, E = x.shape
    q0 = jnp.ones((1, E), jnp.float32)
    wq, wk, wv = jnp.split(params["in_proj_w"], 3, axis=0)
    bq, bk, bv = jnp.split(params["in_proj_b"], 3)
    q = q0 @ wq.T + bq
    k = x @ wk.T + bk
    v = x @ wv.T + bv
    scores = (q @ k.T) / jnp.sqrt(jnp.float32(E))
    attn = jax.nn.softmax(scores, axis=-1)
    ctx = attn @ v
    weighted = ctx @ params["out_proj_w"].T + params["out_proj_b"]
    logits = weighted @ params["cls_w"].T + params["cls_b"]
    probs = jax.nn.softmax(logits, axis=-1) if num_labels > 2 else jax.nn.sigmoid(logits)
    return probs, attn


# ---------------------------------------------------------------------------
# Self-test
# ---------------------------------------------------------------------------
if __name__ == "__main__":
    key = jax.random.PRNGKey(0)
    k_in, k_in2, k_in3, k_p1, k_p2, k_p3, k_p4 = jax.random.split(key, 7)

    # --- small single-tile cases (S=8, E=32), batch of size 1 as in the module ---
    S, E = 8, 32
    inputs = jax.random.normal(k_in, (1, S, E), jnp.float32)

    num_labels = 4                                    # multi-class -> softmax head
    params4 = init_params(k_p1, E, num_labels)
    probs4, attn4 = legal_bert_echr_head(inputs, params4, num_labels)
    jax.block_until_ready((probs4, attn4))
    ref_p4, ref_a4 = _reference(inputs, params4, num_labels)
    np.testing.assert_allclose(np.asarray(probs4), np.asarray(ref_p4), rtol=5e-5, atol=1e-6)
    np.testing.assert_allclose(np.asarray(attn4), np.asarray(ref_a4), rtol=5e-5, atol=1e-6)

    params2 = init_params(k_p2, E, 2)                 # binary -> single-logit sigmoid
    probs2, attn2 = legal_bert_echr_head(inputs, params2, 2)
    jax.block_until_ready((probs2, attn2))
    ref_p2, ref_a2 = _reference(inputs, params2, 2)
    np.testing.assert_allclose(np.asarray(probs2), np.asarray(ref_p2), rtol=5e-5, atol=1e-6)
    np.testing.assert_allclose(np.asarray(attn2), np.asarray(ref_a2), rtol=5e-5, atol=1e-6)

    # --- multi-tile + masked tail: S=300 not divisible by block_s=128 (nt=3) ---
    S2, E2 = 300, 128
    inputs2 = jax.random.normal(k_in2, (1, S2, E2), jnp.float32)
    params5 = init_params(k_p3, E2, 5)
    probs5, attn5 = legal_bert_echr_head(inputs2, params5, 5, block_s=128)
    jax.block_until_ready((probs5, attn5))
    ref_p5, ref_a5 = _reference(inputs2, params5, 5)
    np.testing.assert_allclose(np.asarray(probs5), np.asarray(ref_p5), rtol=1e-4, atol=1e-6)
    np.testing.assert_allclose(np.asarray(attn5), np.asarray(ref_a5), rtol=1e-4, atol=1e-6)

    # --- batched extension (parallel doc axis), multi-tile per doc ---
    B3, S3, E3 = 2, 256, 128
    inputs3 = jax.random.normal(k_in3, (B3, S3, E3), jnp.float32)
    params6 = init_params(k_p4, E3, 3)
    probs_b, attn_b = legal_bert_echr_head_batch(inputs3, params6, 3, block_s=128)
    jax.block_until_ready((probs_b, attn_b))
    for b in range(B3):
        rp, ra = _reference(inputs3[b], params6, 3)
        np.testing.assert_allclose(np.asarray(probs_b[b:b + 1]), np.asarray(rp),
                                   rtol=1e-4, atol=1e-6)
        np.testing.assert_allclose(np.asarray(attn_b[b:b + 1]), np.asarray(ra),
                                   rtol=1e-4, atol=1e-6)

    # --- bf16 activations (MXU-native path, auto tile w/ pack-16 alignment) ---
    probs_bf, attn_bf = legal_bert_echr_head(inputs2.astype(jnp.bfloat16), params5, 5)
    jax.block_until_ready((probs_bf, attn_bf))
    np.testing.assert_allclose(np.asarray(probs_bf), np.asarray(ref_p5), rtol=0, atol=5e-2)
    np.testing.assert_allclose(np.asarray(attn_bf), np.asarray(ref_a5), rtol=0, atol=5e-2)

    print("KERNEL_OK")
</pallas_src>

<mosaic_0001>
module attributes {stable_mosaic.version = 11 : i64} {
  func.func @_echr_head_kernel(%arg0: i32, %arg1: i32, %arg2: memref<1x32xf32, #tpu.memory_space<vmem>>, %arg3: memref<1x8x32xf32, #tpu.memory_space<vmem>>, %arg4: memref<32x4xf32, #tpu.memory_space<vmem>>, %arg5: memref<1x4xf32, #tpu.memory_space<vmem>>, %arg6: memref<1x1x4xf32, #tpu.memory_space<vmem>>, %arg7: memref<1x1x8xf32, #tpu.memory_space<vmem>>, %arg8: memref<1x1xf32, #tpu.memory_space<vmem>>, %arg9: memref<1x1xf32, #tpu.memory_space<vmem>>, %arg10: memref<1x32xf32, #tpu.memory_space<vmem>>) attributes {dimension_semantics = [#tpu.dimension_semantics<parallel>, #tpu.dimension_semantics<arbitrary>], iteration_bounds = array<i64: 1, 1>, scalar_prefetch = 0 : i64, scratch_operands = 3 : i64, tpu.core_type = #tpu.core_type<tc>, window_params = [{pipeline_mode = #tpu.pipeline_mode<synchronous>, transform_indices = @transform_0, window_bounds = array<i64: 1, 32>}, {transform_indices = @transform_1, window_bounds = array<i64: 1, 8, 32>}, {pipeline_mode = #tpu.pipeline_mode<synchronous>, transform_indices = @transform_2, window_bounds = array<i64: 32, 4>}, {pipeline_mode = #tpu.pipeline_mode<synchronous>, transform_indices = @transform_3, window_bounds = array<i64: 1, 4>}, {transform_indices = @transform_4, window_bounds = array<i64: 1, 1, 4>}, {transform_indices = @transform_5, window_bounds = array<i64: 1, 1, 8>}]} {
    %c0_i32 = arith.constant 0 : i32
    %0 = arith.cmpi eq, %arg1, %c0_i32 : i32
    %1 = arith.extui %0 : i1 to i32
    %c0_i32_0 = arith.constant 0 : i32
    %2 = arith.cmpi ne, %1, %c0_i32_0 : i32
    scf.if %2 {
      %cst_24 = arith.constant 0xFF800000 : f32
      %35 = vector.broadcast %cst_24 : f32 to vector<1x1xf32>
      %c0_25 = arith.constant 0 : index
      %c0_26 = arith.constant 0 : index
      %36 = vector.load %arg8[%c0_25, %c0_26] : memref<1x1xf32, #tpu.memory_space<vmem>>, vector<1x1xf32>
      tpu.vector_store %arg8[%c0_25, %c0_26], %35 {strides = array<i32>} : memref<1x1xf32, #tpu.memory_space<vmem>>, vector<1x1xf32>,
      %cst_27 = arith.constant 0.000000e+00 : f32
      %37 = vector.broadcast %cst_27 : f32 to vector<1x1xf32>
      %c0_28 = arith.constant 0 : index
      %c0_29 = arith.constant 0 : index
      %38 = vector.load %arg9[%c0_28, %c0_29] : memref<1x1xf32, #tpu.memory_space<vmem>>, vector<1x1xf32>
      tpu.vector_store %arg9[%c0_28, %c0_29], %37 {strides = array<i32>} : memref<1x1xf32, #tpu.memory_space<vmem>>, vector<1x1xf32>,
      %cst_30 = arith.constant 0.000000e+00 : f32
      %39 = vector.broadcast %cst_30 : f32 to vector<1x32xf32>
      %c0_31 = arith.constant 0 : index
      %c0_32 = arith.constant 0 : index
      %40 = vector.load %arg10[%c0_31, %c0_32] : memref<1x32xf32, #tpu.memory_space<vmem>>, vector<1x32xf32>
      tpu.vector_store %arg10[%c0_31, %c0_32], %39 {strides = array<i32>} : memref<1x32xf32, #tpu.memory_space<vmem>>, vector<1x32xf32>,
    } else {
    }
    %c0 = arith.constant 0 : index
    %c0_1 = arith.constant 0 : index
    %c0_2 = arith.constant 0 : index
    %3 = vector.load %arg3[%c0, %c0_1, %c0_2] : memref<1x8x32xf32, #tpu.memory_space<vmem>>, vector<1x8x32xf32>
    %4 = vector.shape_cast %3 : vector<1x8x32xf32> to vector<8x32xf32>
    %c0_3 = arith.constant 0 : index
    %c0_4 = arith.constant 0 : index
    %5 = vector.load %arg2[%c0_3, %c0_4] : memref<1x32xf32, #tpu.memory_space<vmem>>, vector<1x32xf32>
    %cst = arith.constant dense<0.000000e+00> : vector<1x8xf32>
    %6 = tpu.matmul %5, %4, %cst {dimension_numbers = #tpu.dot_dimension_numbers<[1], [1], [0], [0], [0, 0, 1, 0], [], []>} : vector<1x32xf32>, vector<8x32xf32>, vector<1x8xf32> -> vector<1x8xf32>
    %7 = vector.shape_cast %6 : vector<1x8xf32> to vector<1x1x8xf32>
    %c0_5 = arith.constant 0 : index
    %8 = arith.index_cast %arg1 : i32 to index
    %c0_6 = arith.constant 0 : index
    %9 = vector.load %arg7[%c0_5, %8, %c0_6] : memref<1x1x8xf32, #tpu.memory_space<vmem>>, vector<1x1x8xf32>
    tpu.vector_store %arg7[%c0_5, %8, %c0_6], %7 {strides = array<i32>} : memref<1x1x8xf32, #tpu.memory_space<vmem>>, vector<1x1x8xf32>,
    %c0_7 = arith.constant 0 : index
    %c0_8 = arith.constant 0 : index
    %10 = vector.load %arg8[%c0_7, %c0_8] : memref<1x1xf32, #tpu.memory_space<vmem>>, vector<1x1xf32>
    %cst_9 = arith.constant dense<0xFF800000> : vector<1xf32>
    %11 = vector.multi_reduction <maximumf>, %6, %cst_9 [1] : vector<1x8xf32> to vector<1xf32>
    %12 = vector.shape_cast %11 : vector<1xf32> to vector<1x1xf32>
    %13 = arith.maximumf %10, %12 : vector<1x1xf32>
    %14 = arith.subf %10, %13 : vector<1x1xf32>
    %15 = math.exp %14 : vector<1x1xf32>
    %16 = vector.broadcast %13 : vector<1x1xf32> to vector<1x8xf32>
    %17 = arith.subf %6, %16 : vector<1x8xf32>
    %18 = math.exp %17 : vector<1x8xf32>
    %c0_10 = arith.constant 0 : index
    %c0_11 = arith.constant 0 : index
    %19 = vector.load %arg9[%c0_10, %c0_11] : memref<1x1xf32, #tpu.memory_space<vmem>>, vector<1x1xf32>
    %20 = arith.mulf %15, %19 : vector<1x1xf32>
    %cst_12 = arith.constant dense<0.000000e+00> : vector<1xf32>
    %21 = vector.multi_reduction <add>, %18, %cst_12 [1] : vector<1x8xf32> to vector<1xf32>
    %22 = vector.shape_cast %21 : vector<1xf32> to vector<1x1xf32>
    %23 = arith.addf %20, %22 : vector<1x1xf32>
    %c0_13 = arith.constant 0 : index
    %c0_14 = arith.constant 0 : index
    %24 = vector.load %arg9[%c0_13, %c0_14] : memref<1x1xf32, #tpu.memory_space<vmem>>, vector<1x1xf32>
    tpu.vector_store %arg9[%c0_13, %c0_14], %23 {strides = array<i32>} : memref<1x1xf32, #tpu.memory_space<vmem>>, vector<1x1xf32>,
    %c0_15 = arith.constant 0 : index
    %c0_16 = arith.constant 0 : index
    %25 = vector.load %arg10[%c0_15, %c0_16] : memref<1x32xf32, #tpu.memory_space<vmem>>, vector<1x32xf32>
    %26 = vector.broadcast %15 : vector<1x1xf32> to vector<1x32xf32>
    %27 = arith.mulf %26, %25 : vector<1x32xf32>
    %cst_17 = arith.constant dense<0.000000e+00> : vector<1x32xf32>
    %28 = tpu.matmul %18, %4, %cst_17 {dimension_numbers = #tpu.dot_dimension_numbers<[1], [0], [0], [1], [0, 0, 1, 1], [], []>} : vector<1x8xf32>, vector<8x32xf32>, vector<1x32xf32> -> vector<1x32xf32>
    %29 = arith.addf %27, %28 : vector<1x32xf32>
    %c0_18 = arith.constant 0 : index
    %c0_19 = arith.constant 0 : index
    %30 = vector.load %arg10[%c0_18, %c0_19] : memref<1x32xf32, #tpu.memory_space<vmem>>, vector<1x32xf32>
    tpu.vector_store %arg10[%c0_18, %c0_19], %29 {strides = array<i32>} : memref<1x32xf32, #tpu.memory_space<vmem>>, vector<1x32xf32>,
    %c0_20 = arith.constant 0 : index
    %c0_21 = arith.constant 0 : index
    %31 = vector.load %arg8[%c0_20, %c0_21] : memref<1x1xf32, #tpu.memory_space<vmem>>, vector<1x1xf32>
    tpu.vector_store %arg8[%c0_20, %c0_21], %13 {strides = array<i32>} : memref<1x1xf32, #tpu.memory_space<vmem>>, vector<1x1xf32>,
    %c0_i32_22 = arith.constant 0 : i32
    %32 = arith.cmpi eq, %arg1, %c0_i32_22 : i32
    %33 = arith.extui %32 : i1 to i32
    %c0_i32_23 = arith.constant 0 : i32
    %34 = arith.cmpi ne, %33, %c0_i32_23 : i32
    scf.if %34 {
      %c0_24 = arith.constant 0 : index
      %c0_25 = arith.constant 0 : index
      %35 = vector.load %arg9[%c0_24, %c0_25] : memref<1x1xf32, #tpu.memory_space<vmem>>, vector<1x1xf32>
      %36 = tpu.reciprocal %35 : vector<1x1xf32> -> vector<1x1xf32>
      %c0_26 = arith.constant 0 : index
      %c0_27 = arith.constant 0 : index
      %c0_28 = arith.constant 0 : index
      %37 = vector.load %arg7[%c0_26, %c0_27, %c0_28] : memref<1x1x8xf32, #tpu.memory_space<vmem>>, vector<1x1x8xf32>
      %c0_29 = arith.constant 0 : index
      %c0_30 = arith.constant 0 : index
      %38 = vector.load %arg8[%c0_29, %c0_30] : memref<1x1xf32, #tpu.memory_space<vmem>>, vector<1x1xf32>
      %39 = vector.shape_cast %38 : vector<1x1xf32> to vector<1x1x1xf32>
      %40 = vector.broadcast %39 : vector<1x1x1xf32> to vector<1x1x8xf32>
      %41 = arith.subf %37, %40 : vector<1x1x8xf32>
      %42 = math.exp %41 : vector<1x1x8xf32>
      %43 = vector.shape_cast %36 : vector<1x1xf32> to vector<1x1x1xf32>
      %44 = vector.broadcast %43 : vector<1x1x1xf32> to vector<1x1x8xf32>
      %45 = arith.mulf %42, %44 : vector<1x1x8xf32>
      %c0_31 = arith.constant 0 : index
      %c0_32 = arith.constant 0 : index
      %c0_33 = arith.constant 0 : index
      %46 = vector.load %arg7[%c0_31, %c0_32, %c0_33] : memref<1x1x8xf32, #tpu.memory_space<vmem>>, vector<1x1x8xf32>
      tpu.vector_store %arg7[%c0_31, %c0_32, %c0_33], %45 {strides = array<i32>} : memref<1x1x8xf32, #tpu.memory_space<vmem>>, vector<1x1x8xf32>,
      %c0_34 = arith.constant 0 : index
      %c0_35 = arith.constant 0 : index
      %47 = vector.load %arg10[%c0_34, %c0_35] : memref<1x32xf32, #tpu.memory_space<vmem>>, vector<1x32xf32>
      %48 = vector.broadcast %36 : vector<1x1xf32> to vector<1x32xf32>
      %49 = arith.mulf %47, %48 : vector<1x32xf32>
      %c0_36 = arith.constant 0 : index
      %c0_37 = arith.constant 0 : index
      %50 = vector.load %arg4[%c0_36, %c0_37] : memref<32x4xf32, #tpu.memory_space<vmem>>, vector<32x4xf32>
      %cst_38 = arith.constant dense<0.000000e+00> : vector<1x4xf32>
      %51 = tpu.matmul %49, %50, %cst_38 {dimension_numbers = #tpu.dot_dimension_numbers<[1], [0], [0], [1], [0, 0, 1, 1], [], []>} : vector<1x32xf32>, vector<32x4xf32>, vector<1x4xf32> -> vector<1x4xf32>
      %c0_39 = arith.constant 0 : index
      %c0_40 = arith.constant 0 : index
      %52 = vector.load %arg5[%c0_39, %c0_40] : memref<1x4xf32, #tpu.memory_space<vmem>>, vector<1x4xf32>
      %53 = arith.addf %51, %52 : vector<1x4xf32>
      %cst_41 = arith.constant dense<0xFF800000> : vector<1xf32>
      %54 = vector.multi_reduction <maximumf>, %53, %cst_41 [1] : vector<1x4xf32> to vector<1xf32>
      %55 = vector.shape_cast %54 : vector<1xf32> to vector<1x1xf32>
      %56 = vector.broadcast %55 : vector<1x1xf32> to vector<1x4xf32>
      %57 = arith.subf %53, %56 : vector<1x4xf32>
      %58 = math.exp %57 : vector<1x4xf32>
      %cst_42 = arith.constant dense<0.000000e+00> : vector<1xf32>
      %59 = vector.multi_reduction <add>, %58, %cst_42 [1] : vector<1x4xf32> to vector<1xf32>
      %60 = vector.shape_cast %59 : vector<1xf32> to vector<1x1xf32>
      %61 = tpu.reciprocal %60 : vector<1x1xf32> -> vector<1x1xf32>
      %62 = vector.broadcast %61 : vector<1x1xf32> to vector<1x4xf32>
      %63 = arith.mulf %58, %62 : vector<1x4xf32>
      %64 = vector.shape_cast %63 : vector<1x4xf32> to vector<1x1x4xf32>
      %c0_43 = arith.constant 0 : index
      %c0_44 = arith.constant 0 : index
      %c0_45 = arith.constant 0 : index
      %65 = vector.load %arg6[%c0_43, %c0_44, %c0_45] : memref<1x1x4xf32, #tpu.memory_space<vmem>>, vector<1x1x4xf32>
      tpu.vector_store %arg6[%c0_43, %c0_44, %c0_45], %64 {strides = array<i32>} : memref<1x1x4xf32, #tpu.memory_space<vmem>>, vector<1x1x4xf32>,
    } else {
    }
    return
  }
  func.func @transform_0(%arg0: i32, %arg1: i32) -> (i32, i32) {
    %c0_i32 = arith.constant 0 : i32
    %c0_i32_0 = arith.constant 0 : i32
    %c0_i32_1 = arith.constant 0 : i32
    return %c0_i32, %c0_i32_0 : i32, i32
  }
  func.func @transform_1(%arg0: i32, %arg1: i32) -> (i32, i32, i32) {
    %c0_i32 = arith.constant 0 : i32
    %c0_i32_0 = arith.constant 0 : i32
    return %arg0, %arg1, %c0_i32 : i32, i32, i32
  }
  func.func @transform_2(%arg0: i32, %arg1: i32) -> (i32, i32) {
    %c0_i32 = arith.constant 0 : i32
    %c0_i32_0 = arith.constant 0 : i32
    %c0_i32_1 = arith.constant 0 : i32
    return %c0_i32, %c0_i32_0 : i32, i32
  }
  func.func @transform_3(%arg0: i32, %arg1: i32) -> (i32, i32) {
    %c0_i32 = arith.constant 0 : i32
    %c0_i32_0 = arith.constant 0 : i32
    %c0_i32_1 = arith.constant 0 : i32
    return %c0_i32, %c0_i32_0 : i32, i32
  }
  func.func @transform_4(%arg0: i32, %arg1: i32) -> (i32, i32, i32) {
    %c0_i32 = arith.constant 0 : i32
    %c0_i32_0 = arith.constant 0 : i32
    %c0_i32_1 = arith.constant 0 : i32
    return %arg0, %c0_i32, %c0_i32_0 : i32, i32, i32
  }
  func.func @transform_5(%arg0: i32, %arg1: i32) -> (i32, i32, i32) {
    %c0_i32 = arith.constant 0 : i32
    %c0_i32_0 = arith.constant 0 : i32
    %c0_i32_1 = arith.constant 0 : i32
    return %arg0, %c0_i32, %c0_i32_0 : i32, i32, i32
  }
}

module attributes {stable_mosaic.version = 11 : i64} {
  func.func @_echr_head_kernel(%arg0: i32, %arg1: i32, %arg2: memref<1x32xf32, #tpu.memory_space<vmem>>, %arg3: memref<1x8x32xf32, #tpu.memory_space<vmem>>, %arg4: memref<32x4xf32, #tpu.memory_space<vmem>>, %arg5: memref<1x4xf32, #tpu.memory_space<vmem>>, %arg6: memref<1x1x4xf32, #tpu.memory_space<vmem>>, %arg7: memref<1x1x8xf32, #tpu.memory_space<vmem>>, %arg8: memref<1x1xf32, #tpu.memory_space<vmem>>, %arg9: memref<1x1xf32, #tpu.memory_space<vmem>>, %arg10: memref<1x32xf32, #tpu.memory_space<vmem>>) attributes {dimension_semantics = [#tpu.dimension_semantics<parallel>, #tpu.dimension_semantics<arbitrary>], iteration_bounds = array<i64: 1, 1>, scalar_prefetch = 0 : i64, scratch_operands = 3 : i64, tpu.core_type = #tpu.core_type<tc>, window_params = [{pipeline_mode = #tpu.pipeline_mode<synchronous>, transform_indices = @transform_0, window_bounds = array<i64: 1, 32>}, {transform_indices = @transform_1, window_bounds = array<i64: 1, 8, 32>}, {pipeline_mode = #tpu.pipeline_mode<synchronous>, transform_indices = @transform_2, window_bounds = array<i64: 32, 4>}, {pipeline_mode = #tpu.pipeline_mode<synchronous>, transform_indices = @transform_3, window_bounds = array<i64: 1, 4>}, {transform_indices = @transform_4, window_bounds = array<i64: 1, 1, 4>}, {transform_indices = @transform_5, window_bounds = array<i64: 1, 1, 8>}]} {
    %c0_i32 = arith.constant 0 : i32
    %0 = arith.cmpi eq, %arg1, %c0_i32 : i32
    %1 = arith.extui %0 : i1 to i32
    %c0_i32_0 = arith.constant 0 : i32
    %2 = arith.cmpi ne, %1, %c0_i32_0 : i32
    scf.if %2 {
      %cst_24 = arith.constant 0xFF800000 : f32
      %35 = vector.broadcast %cst_24 : f32 to vector<1x1xf32>
      %c0_25 = arith.constant 0 : index
      %c0_26 = arith.constant 0 : index
      %36 = vector.load %arg8[%c0_25, %c0_26] : memref<1x1xf32, #tpu.memory_space<vmem>>, vector<1x1xf32>
      tpu.vector_store %arg8[%c0_25, %c0_26], %35 {strides = array<i32>} : memref<1x1xf32, #tpu.memory_space<vmem>>, vector<1x1xf32>,
      %cst_27 = arith.constant 0.000000e+00 : f32
      %37 = vector.broadcast %cst_27 : f32 to vector<1x1xf32>
      %c0_28 = arith.constant 0 : index
      %c0_29 = arith.constant 0 : index
      %38 = vector.load %arg9[%c0_28, %c0_29] : memref<1x1xf32, #tpu.memory_space<vmem>>, vector<1x1xf32>
      tpu.vector_store %arg9[%c0_28, %c0_29], %37 {strides = array<i32>} : memref<1x1xf32, #tpu.memory_space<vmem>>, vector<1x1xf32>,
      %cst_30 = arith.constant 0.000000e+00 : f32
      %39 = vector.broadcast %cst_30 : f32 to vector<1x32xf32>
      %c0_31 = arith.constant 0 : index
      %c0_32 = arith.constant 0 : index
      %40 = vector.load %arg10[%c0_31, %c0_32] : memref<1x32xf32, #tpu.memory_space<vmem>>, vector<1x32xf32>
      tpu.vector_store %arg10[%c0_31, %c0_32], %39 {strides = array<i32>} : memref<1x32xf32, #tpu.memory_space<vmem>>, vector<1x32xf32>,
    } else {
    }
    %c0 = arith.constant 0 : index
    %c0_1 = arith.constant 0 : index
    %c0_2 = arith.constant 0 : index
    %3 = vector.load %arg3[%c0, %c0_1, %c0_2] : memref<1x8x32xf32, #tpu.memory_space<vmem>>, vector<1x8x32xf32>
    %4 = vector.shape_cast %3 : vector<1x8x32xf32> to vector<8x32xf32>
    %c0_3 = arith.constant 0 : index
    %c0_4 = arith.constant 0 : index
    %5 = vector.load %arg2[%c0_3, %c0_4] : memref<1x32xf32, #tpu.memory_space<vmem>>, vector<1x32xf32>
    %cst = arith.constant dense<0.000000e+00> : vector<1x8xf32>
    %6 = tpu.matmul %5, %4, %cst {dimension_numbers = #tpu.dot_dimension_numbers<[1], [1], [0], [0], [0, 0, 1, 0], [], []>} : vector<1x32xf32>, vector<8x32xf32>, vector<1x8xf32> -> vector<1x8xf32>
    %7 = vector.shape_cast %6 : vector<1x8xf32> to vector<1x1x8xf32>
    %c0_5 = arith.constant 0 : index
    %8 = arith.index_cast %arg1 : i32 to index
    %c0_6 = arith.constant 0 : index
    %9 = vector.load %arg7[%c0_5, %8, %c0_6] : memref<1x1x8xf32, #tpu.memory_space<vmem>>, vector<1x1x8xf32>
    tpu.vector_store %arg7[%c0_5, %8, %c0_6], %7 {strides = array<i32>} : memref<1x1x8xf32, #tpu.memory_space<vmem>>, vector<1x1x8xf32>,
    %c0_7 = arith.constant 0 : index
    %c0_8 = arith.constant 0 : index
    %10 = vector.load %arg8[%c0_7, %c0_8] : memref<1x1xf32, #tpu.memory_space<vmem>>, vector<1x1xf32>
    %cst_9 = arith.constant dense<0xFF800000> : vector<1xf32>
    %11 = vector.multi_reduction <maximumf>, %6, %cst_9 [1] : vector<1x8xf32> to vector<1xf32>
    %12 = vector.shape_cast %11 : vector<1xf32> to vector<1x1xf32>
    %13 = arith.maximumf %10, %12 : vector<1x1xf32>
    %14 = arith.subf %10, %13 : vector<1x1xf32>
    %15 = math.exp %14 : vector<1x1xf32>
    %16 = vector.broadcast %13 : vector<1x1xf32> to vector<1x8xf32>
    %17 = arith.subf %6, %16 : vector<1x8xf32>
    %18 = math.exp %17 : vector<1x8xf32>
    %c0_10 = arith.constant 0 : index
    %c0_11 = arith.constant 0 : index
    %19 = vector.load %arg9[%c0_10, %c0_11] : memref<1x1xf32, #tpu.memory_space<vmem>>, vector<1x1xf32>
    %20 = arith.mulf %15, %19 : vector<1x1xf32>
    %cst_12 = arith.constant dense<0.000000e+00> : vector<1xf32>
    %21 = vector.multi_reduction <add>, %18, %cst_12 [1] : vector<1x8xf32> to vector<1xf32>
    %22 = vector.shape_cast %21 : vector<1xf32> to vector<1x1xf32>
    %23 = arith.addf %20, %22 : vector<1x1xf32>
    %c0_13 = arith.constant 0 : index
    %c0_14 = arith.constant 0 : index
    %24 = vector.load %arg9[%c0_13, %c0_14] : memref<1x1xf32, #tpu.memory_space<vmem>>, vector<1x1xf32>
    tpu.vector_store %arg9[%c0_13, %c0_14], %23 {strides = array<i32>} : memref<1x1xf32, #tpu.memory_space<vmem>>, vector<1x1xf32>,
    %c0_15 = arith.constant 0 : index
    %c0_16 = arith.constant 0 : index
    %25 = vector.load %arg10[%c0_15, %c0_16] : memref<1x32xf32, #tpu.memory_space<vmem>>, vector<1x32xf32>
    %26 = vector.broadcast %15 : vector<1x1xf32> to vector<1x32xf32>
    %27 = arith.mulf %26, %25 : vector<1x32xf32>
    %cst_17 = arith.constant dense<0.000000e+00> : vector<1x32xf32>
    %28 = tpu.matmul %18, %4, %cst_17 {dimension_numbers = #tpu.dot_dimension_numbers<[1], [0], [0], [1], [0, 0, 1, 1], [], []>} : vector<1x8xf32>, vector<8x32xf32>, vector<1x32xf32> -> vector<1x32xf32>
    %29 = arith.addf %27, %28 : vector<1x32xf32>
    %c0_18 = arith.constant 0 : index
    %c0_19 = arith.constant 0 : index
    %30 = vector.load %arg10[%c0_18, %c0_19] : memref<1x32xf32, #tpu.memory_space<vmem>>, vector<1x32xf32>
    tpu.vector_store %arg10[%c0_18, %c0_19], %29 {strides = array<i32>} : memref<1x32xf32, #tpu.memory_space<vmem>>, vector<1x32xf32>,
    %c0_20 = arith.constant 0 : index
    %c0_21 = arith.constant 0 : index
    %31 = vector.load %arg8[%c0_20, %c0_21] : memref<1x1xf32, #tpu.memory_space<vmem>>, vector<1x1xf32>
    tpu.vector_store %arg8[%c0_20, %c0_21], %13 {strides = array<i32>} : memref<1x1xf32, #tpu.memory_space<vmem>>, vector<1x1xf32>,
    %c0_i32_22 = arith.constant 0 : i32
    %32 = arith.cmpi eq, %arg1, %c0_i32_22 : i32
    %33 = arith.extui %32 : i1 to i32
    %c0_i32_23 = arith.constant 0 : i32
    %34 = arith.cmpi ne, %33, %c0_i32_23 : i32
    scf.if %34 {
      %c0_24 = arith.constant 0 : index
      %c0_25 = arith.constant 0 : index
      %35 = vector.load %arg9[%c0_24, %c0_25] : memref<1x1xf32, #tpu.memory_space<vmem>>, vector<1x1xf32>
      %36 = tpu.reciprocal %35 : vector<1x1xf32> -> vector<1x1xf32>
      %c0_26 = arith.constant 0 : index
      %c0_27 = arith.constant 0 : index
      %c0_28 = arith.constant 0 : index
      %37 = vector.load %arg7[%c0_26, %c0_27, %c0_28] : memref<1x1x8xf32, #tpu.memory_space<vmem>>, vector<1x1x8xf32>
      %c0_29 = arith.constant 0 : index
      %c0_30 = arith.constant 0 : index
      %38 = vector.load %arg8[%c0_29, %c0_30] : memref<1x1xf32, #tpu.memory_space<vmem>>, vector<1x1xf32>
      %39 = vector.shape_cast %38 : vector<1x1xf32> to vector<1x1x1xf32>
      %40 = vector.broadcast %39 : vector<1x1x1xf32> to vector<1x1x8xf32>
      %41 = arith.subf %37, %40 : vector<1x1x8xf32>
      %42 = math.exp %41 : vector<1x1x8xf32>
      %43 = vector.shape_cast %36 : vector<1x1xf32> to vector<1x1x1xf32>
      %44 = vector.broadcast %43 : vector<1x1x1xf32> to vector<1x1x8xf32>
      %45 = arith.mulf %42, %44 : vector<1x1x8xf32>
      %c0_31 = arith.constant 0 : index
      %c0_32 = arith.constant 0 : index
      %c0_33 = arith.constant 0 : index
      %46 = vector.load %arg7[%c0_31, %c0_32, %c0_33] : memref<1x1x8xf32, #tpu.memory_space<vmem>>, vector<1x1x8xf32>
      tpu.vector_store %arg7[%c0_31, %c0_32, %c0_33], %45 {strides = array<i32>} : memref<1x1x8xf32, #tpu.memory_space<vmem>>, vector<1x1x8xf32>,
      %c0_34 = arith.constant 0 : index
      %c0_35 = arith.constant 0 : index
      %47 = vector.load %arg10[%c0_34, %c0_35] : memref<1x32xf32, #tpu.memory_space<vmem>>, vector<1x32xf32>
      %48 = vector.broadcast %36 : vector<1x1xf32> to vector<1x32xf32>
      %49 = arith.mulf %47, %48 : vector<1x32xf32>
      %c0_36 = arith.constant 0 : index
      %c0_37 = arith.constant 0 : index
      %50 = vector.load %arg4[%c0_36, %c0_37] : memref<32x4xf32, #tpu.memory_space<vmem>>, vector<32x4xf32>
      %cst_38 = arith.constant dense<0.000000e+00> : vector<1x4xf32>
      %51 = tpu.matmul %49, %50, %cst_38 {dimension_numbers = #tpu.dot_dimension_numbers<[1], [0], [0], [1], [0, 0, 1, 1], [], []>} : vector<1x32xf32>, vector<32x4xf32>, vector<1x4xf32> -> vector<1x4xf32>
      %c0_39 = arith.constant 0 : index
      %c0_40 = arith.constant 0 : index
      %52 = vector.load %arg5[%c0_39, %c0_40] : memref<1x4xf32, #tpu.memory_space<vmem>>, vector<1x4xf32>
      %53 = arith.addf %51, %52 : vector<1x4xf32>
      %cst_41 = arith.constant dense<0xFF800000> : vector<1xf32>
      %54 = vector.multi_reduction <maximumf>, %53, %cst_41 [1] : vector<1x4xf32> to vector<1xf32>
      %55 = vector.shape_cast %54 : vector<1xf32> to vector<1x1xf32>
      %56 = vector.broadcast %55 : vector<1x1xf32> to vector<1x4xf32>
      %57 = arith.subf %53, %56 : vector<1x4xf32>
      %58 = math.exp %57 : vector<1x4xf32>
      %cst_42 = arith.constant dense<0.000000e+00> : vector<1xf32>
      %59 = vector.multi_reduction <add>, %58, %cst_42 [1] : vector<1x4xf32> to vector<1xf32>
      %60 = vector.shape_cast %59 : vector<1xf32> to vector<1x1xf32>
      %61 = tpu.reciprocal %60 : vector<1x1xf32> -> vector<1x1xf32>
      %62 = vector.broadcast %61 : vector<1x1xf32> to vector<1x4xf32>
      %63 = arith.mulf %58, %62 : vector<1x4xf32>
      %64 = vector.shape_cast %63 : vector<1x4xf32> to vector<1x1x4xf32>
      %c0_43 = arith.constant 0 : index
      %c0_44 = arith.constant 0 : index
      %c0_45 = arith.constant 0 : index
      %65 = vector.load %arg6[%c0_43, %c0_44, %c0_45] : memref<1x1x4xf32, #tpu.memory_space<vmem>>, vector<1x1x4xf32>
      tpu.vector_store %arg6[%c0_43, %c0_44, %c0_45], %64 {strides = array<i32>} : memref<1x1x4xf32, #tpu.memory_space<vmem>>, vector<1x1x4xf32>,
    } else {
    }
    return
  }
  func.func @transform_0(%arg0: i32, %arg1: i32) -> (i32, i32) {
    %c0_i32 = arith.constant 0 : i32
    %c0_i32_0 = arith.constant 0 : i32
    %c0_i32_1 = arith.constant 0 : i32
    return %c0_i32, %c0_i32_0 : i32, i32
  }
  func.func @transform_1(%arg0: i32, %arg1: i32) -> (i32, i32, i32) {
    %c0_i32 = arith.constant 0 : i32
    %c0_i32_0 = arith.constant 0 : i32
    return %arg0, %arg1, %c0_i32 : i32, i32, i32
  }
  func.func @transform_2(%arg0: i32, %arg1: i32) -> (i32, i32) {
    %c0_i32 = arith.constant 0 : i32
    %c0_i32_0 = arith.constant 0 : i32
    %c0_i32_1 = arith.constant 0 : i32
    return %c0_i32, %c0_i32_0 : i32, i32
  }
  func.func @transform_3(%arg0: i32, %arg1: i32) -> (i32, i32) {
    %c0_i32 = arith.constant 0 : i32
    %c0_i32_0 = arith.constant 0 : i32
    %c0_i32_1 = arith.constant 0 : i32
    return %c0_i32, %c0_i32_0 : i32, i32
  }
  func.func @transform_4(%arg0: i32, %arg1: i32) -> (i32, i32, i32) {
    %c0_i32 = arith.constant 0 : i32
    %c0_i32_0 = arith.constant 0 : i32
    %c0_i32_1 = arith.constant 0 : i32
    return %arg0, %c0_i32, %c0_i32_0 : i32, i32, i32
  }
  func.func @transform_5(%arg0: i32, %arg1: i32) -> (i32, i32, i32) {
    %c0_i32 = arith.constant 0 : i32
    %c0_i32_0 = arith.constant 0 : i32
    %c0_i32_1 = arith.constant 0 : i32
    return %arg0, %c0_i32, %c0_i32_0 : i32, i32, i32
  }
}

</mosaic_0001>

<llo_original>
// kernel: tpu_custom_call.1
$region0: #{tpu_custom_call.1}
  #allocation0 [shape = 'u32[]', space=smem, size = 0x4, offset = 0x4, fixed_abs, tag = 'smem constant byte address 0x4 - core index']
  #allocation1 [shape = 'u32[144,128]{1,0:T(1,128)}', space=vmem, size = 0x12000, scoped, tag = 'internal scratch']
  #allocation2 [shape = 'f32[1,1]{1,0:T(1,128)}', space=vmem, size = 0x200, scoped, tag = 'scratch operand']
  #allocation3 [shape = 'f32[1,1]{1,0:T(1,128)}', space=vmem, size = 0x200, scoped, tag = 'scratch operand']
  #allocation4 [shape = 'f32[1,32]{1,0:T(1,128)}', space=vmem, size = 0x200, scoped, tag = 'scratch operand']
  %s0 = inlined_call_operand.vmem [shape: f32[1,32], index: 0, kind: input, shape index: {}]
  %s1 = inlined_call_operand.vmem [shape: f32[1,8,32], index: 1, kind: input, shape index: {}]
  %s2 = inlined_call_operand.vmem [shape: f32[32,4], index: 2, kind: input, shape index: {}]
  %s3 = inlined_call_operand.vmem [shape: f32[1,4], index: 3, kind: input, shape index: {}]
  %s4 = inlined_call_operand.hbm [shape: f32[1,1,4], index: 4, kind: output, shape index: {0}]
  %s5 = inlined_call_operand.hbm [shape: f32[1,1,8], index: 5, kind: output, shape index: {1}]
  %6 = xla_tuple %s4, %s5
  %s7 = sld [smem:[#allocation0]]
  $region42: #{tpu_custom_call.1} parent=0
    _
  %s9 = ssub.s32 1, %s7
  %s10 = scalar_select 0, %s9, %s7
  $region1: #{tpu_custom_call.1} parent=0
    #allocation5 [shape = 'u8[512]{0}', space=vmem, size = 0x400, scoped, tag = 'output window, operand 0, single buffered']
    #allocation6 [shape = 's32[1]{0}', space=sflag, size = 0x4, scoped, tag = 'scoped memory for tpu_custom_call.1']
    #allocation7 [shape = 'u8[512]{0}', space=vmem, size = 0x400, scoped, tag = 'output window, operand 1, single buffered']
    #allocation8 [shape = 's32[1]{0}', space=sflag, size = 0x4, scoped, tag = 'scoped memory for tpu_custom_call.1']
    %11 = vsyncpa [#allocation6], 0
    %12 = vsyncpa [#allocation8], 0
    // Predicated region
    $region2: #{tpu_custom_call.1} parent=1 // pred_check
      _
    $region3: #{tpu_custom_call.1} parent=1 // pred_check_branch
      %14 = sbr.rel (0) target = $region5
    $region4: #{tpu_custom_call.1} parent=1 // pred_region
      _
    $region5: #{tpu_custom_call.1} parent=1 // pred_fallthru
      _
    // Predicated region
    $region6: #{tpu_custom_call.1} parent=1 // pred_check
      _
    $region7: #{tpu_custom_call.1} parent=1 // pred_check_branch
      %16 = sbr.rel (0) target = $region9
    $region8: #{tpu_custom_call.1} parent=1 // pred_region
      _
    $region9: #{tpu_custom_call.1} parent=1 // pred_fallthru
      _
    // Predicated region
    $region10: #{tpu_custom_call.1} parent=1 // pred_check
      _
    $region11: #{tpu_custom_call.1} parent=1 // pred_check_branch
      %18 = sbr.rel (0) target = $region13
    $region12: #{tpu_custom_call.1} parent=1 // pred_region
      _
    $region13: #{tpu_custom_call.1} parent=1 // pred_fallthru
      _
    // Predicated region
    $region14: #{tpu_custom_call.1} parent=1 // pred_check
      _
    $region15: #{tpu_custom_call.1} parent=1 // pred_check_branch
      %20 = sbr.rel (0) target = $region17
    $region16: #{tpu_custom_call.1} parent=1 // pred_region
      _
    $region17: #{tpu_custom_call.1} parent=1 // pred_fallthru
      _
    %p21 = scmp.eq.s32.totalorder 0, 0
    // Predicated region
    $region18: #{tpu_custom_call.1} parent=1 // pred_check
      %p22 = pneg %p21
    $region19: #{tpu_custom_call.1} parent=1 // pred_check_branch
      %24 = sbr.rel (%p22) target = $region21
    $region20: #{tpu_custom_call.1} parent=1 // pred_region
      %vm25 = vcmask 0
      %26 = vst.msk [vmem:[#allocation2] sm:$0x1] %vm25, -inf
      %27 = vst.msk [vmem:[#allocation3] sm:$0x1] %vm25, 0.0
      %vm28 = vcmask 253952
      %29 = vst.msk [vmem:[#allocation4] sm:$0x1] %vm28, 0.0
    $region21: #{tpu_custom_call.1} parent=1 // pred_fallthru
      _
    %v30 = vld [vmem:[%s1] sm:$0xff]
    %v31 = vld [vmem:[%s0] sm:$0x1]
    %vm32 = vcmask 261120
    %v34 = vsel %vm32, %v31, 0
    %v37 = vsel %vm32, %v30, 0
    %39 = vmatprep.subr.mxu0 0.0
    %40 = vmatpush1.xpose.msra.mxu0 %v37
    %41 = vmatprep.subr.mxu0 0.0
    %42 = vmatpush1.xpose.msra.mxu0 0.0
    %43 = vmatprep.subr.mxu0 0.0
    %44 = vmatpush1.xpose.msra.mxu0 0.0
    %45 = vmatprep.subr.mxu0 0.0
    %46 = vmatpush1.xpose.msra.mxu0 0.0
    %47 = vmatprep.subr.mxu0 0.0
    %48 = vmatpush1.xpose.msra.mxu0 0.0
    %49 = vmatprep.subr.mxu0 0.0
    %50 = vmatpush1.xpose.msra.mxu0 0.0
    %51 = vmatprep.subr.mxu0 0.0
    %52 = vmatpush1.xpose.msra.mxu0 0.0
    %53 = vmatprep.subr.mxu0 0.0
    %54 = vmatpush1.xpose.msra.mxu0 0.0
    %55 = vmatprep.subr.mxu0 0.0
    %56 = vmatpush1.xpose.msra.mxu0 0.0
    %57 = vmatprep.subr.mxu0 0.0
    %58 = vmatpush1.xpose.msra.mxu0 0.0
    %59 = vmatprep.subr.mxu0 0.0
    %60 = vmatpush1.xpose.msra.mxu0 0.0
    %61 = vmatprep.subr.mxu0 0.0
    %62 = vmatpush1.xpose.msra.mxu0 0.0
    %63 = vmatprep.subr.mxu0 0.0
    %64 = vmatpush1.xpose.msra.mxu0 0.0
    %65 = vmatprep.subr.mxu0 0.0
    %66 = vmatpush1.xpose.msra.mxu0 0.0
    %67 = vmatprep.subr.mxu0 0.0
    %68 = vmatpush1.xpose.msra.mxu0 0.0
    %69 = vmatprep.subr.mxu0 0.0
    %70 = vmatpush1.xpose.msra.mxu0 0.0
    %71 = vmatprep.subr.mxu0 0.0
    %72 = vmatpush1.xpose.msra.mxu0 0.0
    %73 = vmatprep.subr.mxu0 0.0
    %74 = vmatpush1.xpose.msra.mxu0 0.0
    %75 = vmatprep.subr.mxu0 0.0
    %76 = vmatpush1.xpose.msra.mxu0 0.0
    %77 = vmatprep.subr.mxu0 0.0
    %78 = vmatpush1.xpose.msra.mxu0 0.0
    %79 = vmatprep.subr.mxu0 0.0
    %80 = vmatpush1.xpose.msra.mxu0 0.0
    %81 = vmatprep.subr.mxu0 0.0
    %82 = vmatpush1.xpose.msra.mxu0 0.0
    %83 = vmatprep.subr.mxu0 0.0
    %84 = vmatpush1.xpose.msra.mxu0 0.0
    %85 = vmatprep.subr.mxu0 0.0
    %86 = vmatpush1.xpose.msra.mxu0 0.0
    %87 = vmatprep.subr.mxu0 0.0
    %88 = vmatpush1.xpose.msra.mxu0 0.0
    %89 = vmatprep.subr.mxu0 0.0
    %90 = vmatpush1.xpose.msra.mxu0 0.0
    %91 = vmatprep.subr.mxu0 0.0
    %92 = vmatpush1.xpose.msra.mxu0 0.0
    %93 = vmatprep.subr.mxu0 0.0
    %94 = vmatpush1.xpose.msra.mxu0 0.0
    %95 = vmatprep.subr.mxu0 0.0
    %96 = vmatpush1.xpose.msra.mxu0 0.0
    %97 = vmatprep.subr.mxu0 0.0
    %98 = vmatpush1.xpose.msra.mxu0 0.0
    %99 = vmatprep.subr.mxu0 0.0
    %100 = vmatpush1.xpose.msra.mxu0 0.0
    %101 = vmatprep.subr.mxu0 0.0
    %102 = vmatpush1.xpose.msra.mxu0 0.0
    %103 = vmatprep.mubr.f32.mxu0 0.0
    %104 = vmatmul.mubr.f32.gmra.mrb[0].mxu0 %v34
    %v105 = vpop.f32.mrb[0].mxu0
    %v106 = vadd.f32 0.0, %v105
    %v107 = vpop.f32.mrb[0].mxu0
    %108 = vdwg.mxu0
    %vm109 = vcmask 57344
    %110 = vst.msk [vmem:[#allocation7] sm:$0x1] %vm109, %v106
    %v111 = vld [vmem:[#allocation2] sm:$0x1]
    %v112 = vsel %vm109, %v106, -inf
    %113 = vmax.xlane.f32.xlu0 %v112
    %v114 = vpop.xlane.xlu0 %113
    %v115 = vmax.f32 %v111, %v114
    %v116 = vsub.f32 %v111, %v115
    %v117 = vmul.f32 %v116, 1.442695
    %v118 = vpow.pop %v117
    %120 = vset.pattern.permute.xlu0 0
    %121 = vperm.xlu0 %120, %v115
    %v122 = vpop.permute.xlu0 %121
    %v124 = vlaneseq
    %v125 = vshrl.u32 %v124, 7
    %v126 = vsub.s32 0, %v125
    %v127 = vrot.slane %v122, %v126
    %v128 = vsub.f32 %v106, %v127
    %v129 = vmul.f32 %v128, 1.442695
    %v130 = vpow.pop %v129
    %v131 = vld [vmem:[#allocation3] sm:$0x1]
    %v132 = vmul.f32 %v118, %v131
    %v133 = vsel %vm109, %v130, 0.0
    %134 = vadd.xlane.f32.xlu0 %v133
    %v135 = vpop.xlane.xlu0 %134
    %v136 = vadd.f32 %v132, %v135
    %vm137 = vcmask 0
    %138 = vst.msk [vmem:[#allocation3] sm:$0x1] %vm137, %v136
    %v139 = vld [vmem:[#allocation4] sm:$0x1]
    %141 = vset.pattern.permute.xlu0 0
    %142 = vperm.xlu0 %141, %v118
    %v143 = vpop.permute.xlu0 %142
    %v145 = vlaneseq
    %v146 = vshrl.u32 %v145, 7
    %v147 = vsub.s32 0, %v146
    %v148 = vrot.slane %v143, %v147
    %v149 = vmul.f32 %v148, %v139
    %vm150 = vcmask 64512
    %v152 = vsel %vm150, %v130, 0
    %154 = vmatprep.subr.mxu0 0.0
    %155 = vmatpush1.msra.mxu0 %v30
    %156 = vmatprep.subr.mxu0 0.0
    %157 = vmatpush1.msra.mxu0 0.0
    %158 = vmatprep.subr.mxu0 0.0
    %159 = vmatpush1.msra.mxu0 0.0
    %160 = vmatprep.subr.mxu0 0.0
    %161 = vmatpush1.msra.mxu0 0.0
    %162 = vmatprep.subr.mxu0 0.0
    %163 = vmatpush1.msra.mxu0 0.0
    %164 = vmatprep.subr.mxu0 0.0
    %165 = vmatpush1.msra.mxu0 0.0
    %166 = vmatprep.subr.mxu0 0.0
    %167 = vmatpush1.msra.mxu0 0.0
    %168 = vmatprep.subr.mxu0 0.0
    %169 = vmatpush1.msra.mxu0 0.0
    %170 = vmatprep.subr.mxu0 0.0
    %171 = vmatpush1.msra.mxu0 0.0
    %172 = vmatprep.subr.mxu0 0.0
    %173 = vmatpush1.msra.mxu0 0.0
    %174 = vmatprep.subr.mxu0 0.0
    %175 = vmatpush1.msra.mxu0 0.0
    %176 = vmatprep.subr.mxu0 0.0
    %177 = vmatpush1.msra.mxu0 0.0
    %178 = vmatprep.subr.mxu0 0.0
    %179 = vmatpush1.msra.mxu0 0.0
    %180 = vmatprep.subr.mxu0 0.0
    %181 = vmatpush1.msra.mxu0 0.0
    %182 = vmatprep.subr.mxu0 0.0
    %183 = vmatpush1.msra.mxu0 0.0
    %184 = vmatprep.subr.mxu0 0.0
    %185 = vmatpush1.msra.mxu0 0.0
    %186 = vmatprep.subr.mxu0 0.0
    %187 = vmatpush1.msra.mxu0 0.0
    %188 = vmatprep.subr.mxu0 0.0
    %189 = vmatpush1.msra.mxu0 0.0
    %190 = vmatprep.subr.mxu0 0.0
    %191 = vmatpush1.msra.mxu0 0.0
    %192 = vmatprep.subr.mxu0 0.0
    %193 = vmatpush1.msra.mxu0 0.0
    %194 = vmatprep.subr.mxu0 0.0
    %195 = vmatpush1.msra.mxu0 0.0
    %196 = vmatprep.subr.mxu0 0.0
    %197 = vmatpush1.msra.mxu0 0.0
    %198 = vmatprep.subr.mxu0 0.0
    %199 = vmatpush1.msra.mxu0 0.0
    %200 = vmatprep.subr.mxu0 0.0
    %201 = vmatpush1.msra.mxu0 0.0
    %202 = vmatprep.subr.mxu0 0.0
    %203 = vmatpush1.msra.mxu0 0.0
    %204 = vmatprep.subr.mxu0 0.0
    %205 = vmatpush1.msra.mxu0 0.0
    %206 = vmatprep.subr.mxu0 0.0
    %207 = vmatpush1.msra.mxu0 0.0
    %208 = vmatprep.subr.mxu0 0.0
    %209 = vmatpush1.msra.mxu0 0.0
    %210 = vmatprep.subr.mxu0 0.0
    %211 = vmatpush1.msra.mxu0 0.0
    %212 = vmatprep.subr.mxu0 0.0
    %213 = vmatpush1.msra.mxu0 0.0
    %214 = vmatprep.subr.mxu0 0.0
    %215 = vmatpush1.msra.mxu0 0.0
    %216 = vmatprep.subr.mxu0 0.0
    %217 = vmatpush1.msra.mxu0 0.0
    %218 = vmatprep.mubr.f32.mxu0 0.0
    %219 = vmatmul.mubr.f32.gmra.mrb[0].mxu0 %v152
    %v220 = vpop.f32.mrb[0].mxu0
    %v221 = vadd.f32 0.0, %v220
    %v222 = vpop.f32.mrb[0].mxu0
    %223 = vdwg.mxu0
    %v224 = vadd.f32 %v149, %v221
    %vm225 = vcmask 253952
    %226 = vst.msk [vmem:[#allocation4] sm:$0x1] %vm225, %v224
    %227 = vst.msk [vmem:[#allocation2] sm:$0x1] %vm137, %v115
    // Predicated region
    $region22: #{tpu_custom_call.1} parent=1 // pred_check
      %p228 = pneg %p21
    $region23: #{tpu_custom_call.1} parent=1 // pred_check_branch
      %230 = sbr.rel (%p228) target = $region25
    $region24: #{tpu_custom_call.1} parent=1 // pred_region
      %v231 = vld [vmem:[#allocation3] sm:$0x1]
      %v232 = vrcp.pop %v231
      %v233 = vld [vmem:[#allocation7] sm:$0x1]
      %v234 = vld [vmem:[#allocation2] sm:$0x1]
      %236 = vset.pattern.permute.xlu0 0
      %237 = vperm.xlu0 %236, %v234
      %v238 = vpop.permute.xlu0 %237
      %v240 = vlaneseq
      %v241 = vshrl.u32 %v240, 7
      %v242 = vsub.s32 0, %v241
      %v243 = vrot.slane %v238, %v242
      %v244 = vsub.f32 %v233, %v243
      %v245 = vmul.f32 %v244, 1.442695
      %v246 = vpow.pop %v245
      %248 = vset.pattern.permute.xlu0 0
      %249 = vperm.xlu0 %248, %v232
      %v250 = vpop.permute.xlu0 %249
      %v252 = vlaneseq
      %v253 = vshrl.u32 %v252, 7
      %v254 = vsub.s32 0, %v253
      %v255 = vrot.slane %v250, %v254
      %v256 = vmul.f32 %v246, %v255
      %257 = vst.msk [vmem:[#allocation7] sm:$0x1] %vm109, %v256
      %v258 = vld [vmem:[#allocation4] sm:$0x1]
      %v259 = vmul.f32 %v258, %v255
      %v260 = vld [vmem:[%s2] sm:$0xff]
      %v261 = vld [vmem:[%s2 + $0x8] sm:$0xff]
      %v262 = vld [vmem:[%s2 + $0x10] sm:$0xff]
      %v263 = vld [vmem:[%s2 + $0x18] sm:$0xff]
      %v264 = vld [vmem:[%s3] sm:$0x1]
      %v266 = vsel %vm32, %v259, 0
      %268 = vmatprep.subr.mxu0 0.0
      %269 = vmatpush1.msra.mxu0 %v260
      %270 = vmatprep.subr.mxu0 0.0
      %271 = vmatpush1.msra.mxu0 %v261
      %272 = vmatprep.subr.mxu0 0.0
      %273 = vmatpush1.msra.mxu0 %v262
      %274 = vmatprep.subr.mxu0 0.0
      %275 = vmatpush1.msra.mxu0 %v263
      %276 = vmatprep.subr.mxu0 0.0
      %277 = vmatpush1.msra.mxu0 0.0
      %278 = vmatprep.subr.mxu0 0.0
      %279 = vmatpush1.msra.mxu0 0.0
      %280 = vmatprep.subr.mxu0 0.0
      %281 = vmatpush1.msra.mxu0 0.0
      %282 = vmatprep.subr.mxu0 0.0
      %283 = vmatpush1.msra.mxu0 0.0
      %284 = vmatprep.subr.mxu0 0.0
      %285 = vmatpush1.msra.mxu0 0.0
      %286 = vmatprep.subr.mxu0 0.0
      %287 = vmatpush1.msra.mxu0 0.0
      %288 = vmatprep.subr.mxu0 0.0
      %289 = vmatpush1.msra.mxu0 0.0
      %290 = vmatprep.subr.mxu0 0.0
      %291 = vmatpush1.msra.mxu0 0.0
      %292 = vmatprep.subr.mxu0 0.0
      %293 = vmatpush1.msra.mxu0 0.0
      %294 = vmatprep.subr.mxu0 0.0
      %295 = vmatpush1.msra.mxu0 0.0
      %296 = vmatprep.subr.mxu0 0.0
      %297 = vmatpush1.msra.mxu0 0.0
      %298 = vmatprep.subr.mxu0 0.0
      %299 = vmatpush1.msra.mxu0 0.0
      %300 = vmatprep.subr.mxu0 0.0
      %301 = vmatpush1.msra.mxu0 0.0
      %302 = vmatprep.subr.mxu0 0.0
      %303 = vmatpush1.msra.mxu0 0.0
      %304 = vmatprep.subr.mxu0 0.0
      %305 = vmatpush1.msra.mxu0 0.0
      %306 = vmatprep.subr.mxu0 0.0
      %307 = vmatpush1.msra.mxu0 0.0
      %308 = vmatprep.subr.mxu0 0.0
      %309 = vmatpush1.msra.mxu0 0.0
      %310 = vmatprep.subr.mxu0 0.0
      %311 = vmatpush1.msra.mxu0 0.0
      %312 = vmatprep.subr.mxu0 0.0
      %313 = vmatpush1.msra.mxu0 0.0
      %314 = vmatprep.subr.mxu0 0.0
      %315 = vmatpush1.msra.mxu0 0.0
      %316 = vmatprep.subr.mxu0 0.0
      %317 = vmatpush1.msra.mxu0 0.0
      %318 = vmatprep.subr.mxu0 0.0
      %319 = vmatpush1.msra.mxu0 0.0
      %320 = vmatprep.subr.mxu0 0.0
      %321 = vmatpush1.msra.mxu0 0.0
      %322 = vmatprep.subr.mxu0 0.0
      %323 = vmatpush1.msra.mxu0 0.0
      %324 = vmatprep.subr.mxu0 0.0
      %325 = vmatpush1.msra.mxu0 0.0
      %326 = vmatprep.subr.mxu0 0.0
      %327 = vmatpush1.msra.mxu0 0.0
      %328 = vmatprep.subr.mxu0 0.0
      %329 = vmatpush1.msra.mxu0 0.0
      %330 = vmatprep.subr.mxu0 0.0
      %331 = vmatpush1.msra.mxu0 0.0
      %332 = vmatprep.mubr.f32.mxu0 0.0
      %333 = vmatmul.mubr.f32.gmra.mrb[0].mxu0 %v266
      %v334 = vpop.f32.mrb[0].mxu0
      %v335 = vadd.f32 %v264, %v334
      %v336 = vpop.f32.mrb[0].mxu0
      %337 = vdwg.mxu0
      %vm338 = vcmask 24576
      %v339 = vsel %vm338, %v335, -inf
      %340 = vmax.xlane.f32.xlu0 %v339
      %v341 = vpop.xlane.xlu0 %340
      %v342 = vsub.f32 %v335, %v341
      %v343 = vmul.f32 %v342, 1.442695
      %v344 = vpow.pop %v343
      %v345 = vsel %vm338, %v344, 0.0
      %346 = vadd.xlane.f32.xlu0 %v345
      %v347 = vpop.xlane.xlu0 %346
      %v348 = vrcp.pop %v347
      %v349 = vmul.f32 %v344, %v348
      %350 = vst.msk [vmem:[#allocation5] sm:$0x1] %vm338, %v349
    $region25: #{tpu_custom_call.1} parent=1 // pred_fallthru
      _
    // Predicated region
    $region26: #{tpu_custom_call.1} parent=1 // pred_check
      _
    $region27: #{tpu_custom_call.1} parent=1 // pred_check_branch
      %352 = sbr.rel (0) target = $region29
    $region28: #{tpu_custom_call.1} parent=1 // pred_region
      %s354 = ssub.s32 16, 16
      %355 = vsyncadd [#allocation6], %s354
      %s357 = sshll.u32 [#allocation5], 4
      %s358 = int_to_ptr.vmem [resolvable:$true] %s357
      %360 = dma.vmem_to_hbm [thread:$0]  %s358, 16, %s4, [#allocation6]
    $region29: #{tpu_custom_call.1} parent=1 // pred_fallthru
      _
    // Predicated region
    $region30: #{tpu_custom_call.1} parent=1 // pred_check
      _
    $region31: #{tpu_custom_call.1} parent=1 // pred_check_branch
      %362 = sbr.rel (0) target = $region33
    $region32: #{tpu_custom_call.1} parent=1 // pred_region
      %s364 = ssub.s32 16, 16
      %365 = vsyncadd [#allocation8], %s364
      %s367 = sshll.u32 [#allocation7], 4
      %s368 = int_to_ptr.vmem [resolvable:$true] %s367
      %370 = dma.vmem_to_hbm [thread:$0]  %s368, 16, %s5, [#allocation8]
    $region33: #{tpu_custom_call.1} parent=1 // pred_fallthru
      _
    // Predicated region
    $region34: #{tpu_custom_call.1} parent=1 // pred_check
      _
    $region35: #{tpu_custom_call.1} parent=1 // pred_check_branch
      %372 = sbr.rel (0) target = $region37
    $region36: #{tpu_custom_call.1} parent=1 // pred_region
      %373 = dma.done [#allocation6], 16
    $region37: #{tpu_custom_call.1} parent=1 // pred_fallthru
      _
    // Predicated region
    $region38: #{tpu_custom_call.1} parent=1 // pred_check
      _
    $region39: #{tpu_custom_call.1} parent=1 // pred_check_branch
      %375 = sbr.rel (0) target = $region41
    $region40: #{tpu_custom_call.1} parent=1 // pred_region
      %376 = dma.done [#allocation8], 16
    $region41: #{tpu_custom_call.1} parent=1 // pred_fallthru
      _
    %377 = vsyncpa [#allocation6], 1
    %378 = vsyncpa [#allocation8], 1

// kernel: tpu_custom_call.1
$region0: #{tpu_custom_call.1}
  #allocation0 [shape = 'u32[]', space=smem, size = 0x4, offset = 0x4, fixed_abs, tag = 'smem constant byte address 0x4 - core index']
  #allocation1 [shape = 'u32[144,128]{1,0:T(1,128)}', space=vmem, size = 0x12000, scoped, tag = 'internal scratch']
  #allocation2 [shape = 'f32[1,1]{1,0:T(1,128)}', space=vmem, size = 0x200, scoped, tag = 'scratch operand']
  #allocation3 [shape = 'f32[1,1]{1,0:T(1,128)}', space=vmem, size = 0x200, scoped, tag = 'scratch operand']
  #allocation4 [shape = 'f32[1,32]{1,0:T(1,128)}', space=vmem, size = 0x200, scoped, tag = 'scratch operand']
  %s0 = inlined_call_operand.vmem [shape: f32[1,32], index: 0, kind: input, shape index: {}]
  %s1 = inlined_call_operand.vmem [shape: f32[1,8,32], index: 1, kind: input, shape index: {}]
  %s2 = inlined_call_operand.vmem [shape: f32[32,4], index: 2, kind: input, shape index: {}]
  %s3 = inlined_call_operand.vmem [shape: f32[1,4], index: 3, kind: input, shape index: {}]
  %s4 = inlined_call_operand.hbm [shape: f32[1,1,4], index: 4, kind: output, shape index: {0}]
  %s5 = inlined_call_operand.hbm [shape: f32[1,1,8], index: 5, kind: output, shape index: {1}]
  %6 = xla_tuple %s4, %s5
  %s7 = sld [smem:[#allocation0]]
  $region42: #{tpu_custom_call.1} parent=0
    _
  %s9 = ssub.s32 1, %s7
  %s10 = scalar_select 0, %s9, %s7
  $region1: #{tpu_custom_call.1} parent=0
    #allocation5 [shape = 'u8[512]{0}', space=vmem, size = 0x400, scoped, tag = 'output window, operand 0, single buffered']
    #allocation6 [shape = 's32[1]{0}', space=sflag, size = 0x4, scoped, tag = 'scoped memory for tpu_custom_call.1']
    #allocation7 [shape = 'u8[512]{0}', space=vmem, size = 0x400, scoped, tag = 'output window, operand 1, single buffered']
    #allocation8 [shape = 's32[1]{0}', space=sflag, size = 0x4, scoped, tag = 'scoped memory for tpu_custom_call.1']
    %11 = vsyncpa [#allocation6], 0
    %12 = vsyncpa [#allocation8], 0
    // Predicated region
    $region2: #{tpu_custom_call.1} parent=1 // pred_check
      _
    $region3: #{tpu_custom_call.1} parent=1 // pred_check_branch
      %14 = sbr.rel (0) target = $region5
    $region4: #{tpu_custom_call.1} parent=1 // pred_region
      _
    $region5: #{tpu_custom_call.1} parent=1 // pred_fallthru
      _
    // Predicated region
    $region6: #{tpu_custom_call.1} parent=1 // pred_check
      _
    $region7: #{tpu_custom_call.1} parent=1 // pred_check_branch
      %16 = sbr.rel (0) target = $region9
    $region8: #{tpu_custom_call.1} parent=1 // pred_region
      _
    $region9: #{tpu_custom_call.1} parent=1 // pred_fallthru
      _
    // Predicated region
    $region10: #{tpu_custom_call.1} parent=1 // pred_check
      _
    $region11: #{tpu_custom_call.1} parent=1 // pred_check_branch
      %18 = sbr.rel (0) target = $region13
    $region12: #{tpu_custom_call.1} parent=1 // pred_region
      _
    $region13: #{tpu_custom_call.1} parent=1 // pred_fallthru
      _
    // Predicated region
    $region14: #{tpu_custom_call.1} parent=1 // pred_check
      _
    $region15: #{tpu_custom_call.1} parent=1 // pred_check_branch
      %20 = sbr.rel (0) target = $region17
    $region16: #{tpu_custom_call.1} parent=1 // pred_region
      _
    $region17: #{tpu_custom_call.1} parent=1 // pred_fallthru
      _
    %p21 = scmp.eq.s32.totalorder 0, 0
    // Predicated region
    $region18: #{tpu_custom_call.1} parent=1 // pred_check
      %p22 = pneg %p21
    $region19: #{tpu_custom_call.1} parent=1 // pred_check_branch
      %24 = sbr.rel (%p22) target = $region21
    $region20: #{tpu_custom_call.1} parent=1 // pred_region
      %vm25 = vcmask 0
      %26 = vst.msk [vmem:[#allocation2] sm:$0x1] %vm25, -inf
      %27 = vst.msk [vmem:[#allocation3] sm:$0x1] %vm25, 0.0
      %vm28 = vcmask 253952
      %29 = vst.msk [vmem:[#allocation4] sm:$0x1] %vm28, 0.0
    $region21: #{tpu_custom_call.1} parent=1 // pred_fallthru
      _
    %v30 = vld [vmem:[%s1] sm:$0xff]
    %v31 = vld [vmem:[%s0] sm:$0x1]
    %vm32 = vcmask 261120
    %v34 = vsel %vm32, %v31, 0
    %v37 = vsel %vm32, %v30, 0
    %39 = vmatprep.subr.mxu0 0.0
    %40 = vmatpush1.xpose.msra.mxu0 %v37
    %41 = vmatprep.subr.mxu0 0.0
    %42 = vmatpush1.xpose.msra.mxu0 0.0
    %43 = vmatprep.subr.mxu0 0.0
    %44 = vmatpush1.xpose.msra.mxu0 0.0
    %45 = vmatprep.subr.mxu0 0.0
    %46 = vmatpush1.xpose.msra.mxu0 0.0
    %47 = vmatprep.subr.mxu0 0.0
    %48 = vmatpush1.xpose.msra.mxu0 0.0
    %49 = vmatprep.subr.mxu0 0.0
    %50 = vmatpush1.xpose.msra.mxu0 0.0
    %51 = vmatprep.subr.mxu0 0.0
    %52 = vmatpush1.xpose.msra.mxu0 0.0
    %53 = vmatprep.subr.mxu0 0.0
    %54 = vmatpush1.xpose.msra.mxu0 0.0
    %55 = vmatprep.subr.mxu0 0.0
    %56 = vmatpush1.xpose.msra.mxu0 0.0
    %57 = vmatprep.subr.mxu0 0.0
    %58 = vmatpush1.xpose.msra.mxu0 0.0
    %59 = vmatprep.subr.mxu0 0.0
    %60 = vmatpush1.xpose.msra.mxu0 0.0
    %61 = vmatprep.subr.mxu0 0.0
    %62 = vmatpush1.xpose.msra.mxu0 0.0
    %63 = vmatprep.subr.mxu0 0.0
    %64 = vmatpush1.xpose.msra.mxu0 0.0
    %65 = vmatprep.subr.mxu0 0.0
    %66 = vmatpush1.xpose.msra.mxu0 0.0
    %67 = vmatprep.subr.mxu0 0.0
    %68 = vmatpush1.xpose.msra.mxu0 0.0
    %69 = vmatprep.subr.mxu0 0.0
    %70 = vmatpush1.xpose.msra.mxu0 0.0
    %71 = vmatprep.subr.mxu0 0.0
    %72 = vmatpush1.xpose.msra.mxu0 0.0
    %73 = vmatprep.subr.mxu0 0.0
    %74 = vmatpush1.xpose.msra.mxu0 0.0
    %75 = vmatprep.subr.mxu0 0.0
    %76 = vmatpush1.xpose.msra.mxu0 0.0
    %77 = vmatprep.subr.mxu0 0.0
    %78 = vmatpush1.xpose.msra.mxu0 0.0
    %79 = vmatprep.subr.mxu0 0.0
    %80 = vmatpush1.xpose.msra.mxu0 0.0
    %81 = vmatprep.subr.mxu0 0.0
    %82 = vmatpush1.xpose.msra.mxu0 0.0
    %83 = vmatprep.subr.mxu0 0.0
    %84 = vmatpush1.xpose.msra.mxu0 0.0
    %85 = vmatprep.subr.mxu0 0.0
    %86 = vmatpush1.xpose.msra.mxu0 0.0
    %87 = vmatprep.subr.mxu0 0.0
    %88 = vmatpush1.xpose.msra.mxu0 0.0
    %89 = vmatprep.subr.mxu0 0.0
    %90 = vmatpush1.xpose.msra.mxu0 0.0
    %91 = vmatprep.subr.mxu0 0.0
    %92 = vmatpush1.xpose.msra.mxu0 0.0
    %93 = vmatprep.subr.mxu0 0.0
    %94 = vmatpush1.xpose.msra.mxu0 0.0
    %95 = vmatprep.subr.mxu0 0.0
    %96 = vmatpush1.xpose.msra.mxu0 0.0
    %97 = vmatprep.subr.mxu0 0.0
    %98 = vmatpush1.xpose.msra.mxu0 0.0
    %99 = vmatprep.subr.mxu0 0.0
    %100 = vmatpush1.xpose.msra.mxu0 0.0
    %101 = vmatprep.subr.mxu0 0.0
    %102 = vmatpush1.xpose.msra.mxu0 0.0
    %103 = vmatprep.mubr.f32.mxu0 0.0
    %104 = vmatmul.mubr.f32.gmra.mrb[0].mxu0 %v34
    %v105 = vpop.f32.mrb[0].mxu0
    %v106 = vadd.f32 0.0, %v105
    %v107 = vpop.f32.mrb[0].mxu0
    %108 = vdwg.mxu0
    %vm109 = vcmask 57344
    %110 = vst.msk [vmem:[#allocation7] sm:$0x1] %vm109, %v106
    %v111 = vld [vmem:[#allocation2] sm:$0x1]
    %v112 = vsel %vm109, %v106, -inf
    %113 = vmax.xlane.f32.xlu0 %v112
    %v114 = vpop.xlane.xlu0 %113
    %v115 = vmax.f32 %v111, %v114
    %v116 = vsub.f32 %v111, %v115
    %v117 = vmul.f32 %v116, 1.442695
    %v118 = vpow.pop %v117
    %120 = vset.pattern.permute.xlu0 0
    %121 = vperm.xlu0 %120, %v115
    %v122 = vpop.permute.xlu0 %121
    %v124 = vlaneseq
    %v125 = vshrl.u32 %v124, 7
    %v126 = vsub.s32 0, %v125
    %v127 = vrot.slane %v122, %v126
    %v128 = vsub.f32 %v106, %v127
    %v129 = vmul.f32 %v128, 1.442695
    %v130 = vpow.pop %v129
    %v131 = vld [vmem:[#allocation3] sm:$0x1]
    %v132 = vmul.f32 %v118, %v131
    %v133 = vsel %vm109, %v130, 0.0
    %134 = vadd.xlane.f32.xlu0 %v133
    %v135 = vpop.xlane.xlu0 %134
    %v136 = vadd.f32 %v132, %v135
    %vm137 = vcmask 0
    %138 = vst.msk [vmem:[#allocation3] sm:$0x1] %vm137, %v136
    %v139 = vld [vmem:[#allocation4] sm:$0x1]
    %141 = vset.pattern.permute.xlu0 0
    %142 = vperm.xlu0 %141, %v118
    %v143 = vpop.permute.xlu0 %142
    %v145 = vlaneseq
    %v146 = vshrl.u32 %v145, 7
    %v147 = vsub.s32 0, %v146
    %v148 = vrot.slane %v143, %v147
    %v149 = vmul.f32 %v148, %v139
    %vm150 = vcmask 64512
    %v152 = vsel %vm150, %v130, 0
    %154 = vmatprep.subr.mxu0 0.0
    %155 = vmatpush1.msra.mxu0 %v30
    %156 = vmatprep.subr.mxu0 0.0
    %157 = vmatpush1.msra.mxu0 0.0
    %158 = vmatprep.subr.mxu0 0.0
    %159 = vmatpush1.msra.mxu0 0.0
    %160 = vmatprep.subr.mxu0 0.0
    %161 = vmatpush1.msra.mxu0 0.0
    %162 = vmatprep.subr.mxu0 0.0
    %163 = vmatpush1.msra.mxu0 0.0
    %164 = vmatprep.subr.mxu0 0.0
    %165 = vmatpush1.msra.mxu0 0.0
    %166 = vmatprep.subr.mxu0 0.0
    %167 = vmatpush1.msra.mxu0 0.0
    %168 = vmatprep.subr.mxu0 0.0
    %169 = vmatpush1.msra.mxu0 0.0
    %170 = vmatprep.subr.mxu0 0.0
    %171 = vmatpush1.msra.mxu0 0.0
    %172 = vmatprep.subr.mxu0 0.0
    %173 = vmatpush1.msra.mxu0 0.0
    %174 = vmatprep.subr.mxu0 0.0
    %175 = vmatpush1.msra.mxu0 0.0
    %176 = vmatprep.subr.mxu0 0.0
    %177 = vmatpush1.msra.mxu0 0.0
    %178 = vmatprep.subr.mxu0 0.0
    %179 = vmatpush1.msra.mxu0 0.0
    %180 = vmatprep.subr.mxu0 0.0
    %181 = vmatpush1.msra.mxu0 0.0
    %182 = vmatprep.subr.mxu0 0.0
    %183 = vmatpush1.msra.mxu0 0.0
    %184 = vmatprep.subr.mxu0 0.0
    %185 = vmatpush1.msra.mxu0 0.0
    %186 = vmatprep.subr.mxu0 0.0
    %187 = vmatpush1.msra.mxu0 0.0
    %188 = vmatprep.subr.mxu0 0.0
    %189 = vmatpush1.msra.mxu0 0.0
    %190 = vmatprep.subr.mxu0 0.0
    %191 = vmatpush1.msra.mxu0 0.0
    %192 = vmatprep.subr.mxu0 0.0
    %193 = vmatpush1.msra.mxu0 0.0
    %194 = vmatprep.subr.mxu0 0.0
    %195 = vmatpush1.msra.mxu0 0.0
    %196 = vmatprep.subr.mxu0 0.0
    %197 = vmatpush1.msra.mxu0 0.0
    %198 = vmatprep.subr.mxu0 0.0
    %199 = vmatpush1.msra.mxu0 0.0
    %200 = vmatprep.subr.mxu0 0.0
    %201 = vmatpush1.msra.mxu0 0.0
    %202 = vmatprep.subr.mxu0 0.0
    %203 = vmatpush1.msra.mxu0 0.0
    %204 = vmatprep.subr.mxu0 0.0
    %205 = vmatpush1.msra.mxu0 0.0
    %206 = vmatprep.subr.mxu0 0.0
    %207 = vmatpush1.msra.mxu0 0.0
    %208 = vmatprep.subr.mxu0 0.0
    %209 = vmatpush1.msra.mxu0 0.0
    %210 = vmatprep.subr.mxu0 0.0
    %211 = vmatpush1.msra.mxu0 0.0
    %212 = vmatprep.subr.mxu0 0.0
    %213 = vmatpush1.msra.mxu0 0.0
    %214 = vmatprep.subr.mxu0 0.0
    %215 = vmatpush1.msra.mxu0 0.0
    %216 = vmatprep.subr.mxu0 0.0
    %217 = vmatpush1.msra.mxu0 0.0
    %218 = vmatprep.mubr.f32.mxu0 0.0
    %219 = vmatmul.mubr.f32.gmra.mrb[0].mxu0 %v152
    %v220 = vpop.f32.mrb[0].mxu0
    %v221 = vadd.f32 0.0, %v220
    %v222 = vpop.f32.mrb[0].mxu0
    %223 = vdwg.mxu0
    %v224 = vadd.f32 %v149, %v221
    %vm225 = vcmask 253952
    %226 = vst.msk [vmem:[#allocation4] sm:$0x1] %vm225, %v224
    %227 = vst.msk [vmem:[#allocation2] sm:$0x1] %vm137, %v115
    // Predicated region
    $region22: #{tpu_custom_call.1} parent=1 // pred_check
      %p228 = pneg %p21
    $region23: #{tpu_custom_call.1} parent=1 // pred_check_branch
      %230 = sbr.rel (%p228) target = $region25
    $region24: #{tpu_custom_call.1} parent=1 // pred_region
      %v231 = vld [vmem:[#allocation3] sm:$0x1]
      %v232 = vrcp.pop %v231
      %v233 = vld [vmem:[#allocation7] sm:$0x1]
      %v234 = vld [vmem:[#allocation2] sm:$0x1]
      %236 = vset.pattern.permute.xlu0 0
      %237 = vperm.xlu0 %236, %v234
      %v238 = vpop.permute.xlu0 %237
      %v240 = vlaneseq
      %v241 = vshrl.u32 %v240, 7
      %v242 = vsub.s32 0, %v241
      %v243 = vrot.slane %v238, %v242
      %v244 = vsub.f32 %v233, %v243
      %v245 = vmul.f32 %v244, 1.442695
      %v246 = vpow.pop %v245
      %248 = vset.pattern.permute.xlu0 0
      %249 = vperm.xlu0 %248, %v232
      %v250 = vpop.permute.xlu0 %249
      %v252 = vlaneseq
      %v253 = vshrl.u32 %v252, 7
      %v254 = vsub.s32 0, %v253
      %v255 = vrot.slane %v250, %v254
      %v256 = vmul.f32 %v246, %v255
      %257 = vst.msk [vmem:[#allocation7] sm:$0x1] %vm109, %v256
      %v258 = vld [vmem:[#allocation4] sm:$0x1]
      %v259 = vmul.f32 %v258, %v255
      %v260 = vld [vmem:[%s2] sm:$0xff]
      %v261 = vld [vmem:[%s2 + $0x8] sm:$0xff]
      %v262 = vld [vmem:[%s2 + $0x10] sm:$0xff]
      %v263 = vld [vmem:[%s2 + $0x18] sm:$0xff]
      %v264 = vld [vmem:[%s3] sm:$0x1]
      %v266 = vsel %vm32, %v259, 0
      %268 = vmatprep.subr.mxu0 0.0
      %269 = vmatpush1.msra.mxu0 %v260
      %270 = vmatprep.subr.mxu0 0.0
      %271 = vmatpush1.msra.mxu0 %v261
      %272 = vmatprep.subr.mxu0 0.0
      %273 = vmatpush1.msra.mxu0 %v262
      %274 = vmatprep.subr.mxu0 0.0
      %275 = vmatpush1.msra.mxu0 %v263
      %276 = vmatprep.subr.mxu0 0.0
      %277 = vmatpush1.msra.mxu0 0.0
      %278 = vmatprep.subr.mxu0 0.0
      %279 = vmatpush1.msra.mxu0 0.0
      %280 = vmatprep.subr.mxu0 0.0
      %281 = vmatpush1.msra.mxu0 0.0
      %282 = vmatprep.subr.mxu0 0.0
      %283 = vmatpush1.msra.mxu0 0.0
      %284 = vmatprep.subr.mxu0 0.0
      %285 = vmatpush1.msra.mxu0 0.0
      %286 = vmatprep.subr.mxu0 0.0
      %287 = vmatpush1.msra.mxu0 0.0
      %288 = vmatprep.subr.mxu0 0.0
      %289 = vmatpush1.msra.mxu0 0.0
      %290 = vmatprep.subr.mxu0 0.0
      %291 = vmatpush1.msra.mxu0 0.0
      %292 = vmatprep.subr.mxu0 0.0
      %293 = vmatpush1.msra.mxu0 0.0
      %294 = vmatprep.subr.mxu0 0.0
      %295 = vmatpush1.msra.mxu0 0.0
      %296 = vmatprep.subr.mxu0 0.0
      %297 = vmatpush1.msra.mxu0 0.0
      %298 = vmatprep.subr.mxu0 0.0
      %299 = vmatpush1.msra.mxu0 0.0
      %300 = vmatprep.subr.mxu0 0.0
      %301 = vmatpush1.msra.mxu0 0.0
      %302 = vmatprep.subr.mxu0 0.0
      %303 = vmatpush1.msra.mxu0 0.0
      %304 = vmatprep.subr.mxu0 0.0
      %305 = vmatpush1.msra.mxu0 0.0
      %306 = vmatprep.subr.mxu0 0.0
      %307 = vmatpush1.msra.mxu0 0.0
      %308 = vmatprep.subr.mxu0 0.0
      %309 = vmatpush1.msra.mxu0 0.0
      %310 = vmatprep.subr.mxu0 0.0
      %311 = vmatpush1.msra.mxu0 0.0
      %312 = vmatprep.subr.mxu0 0.0
      %313 = vmatpush1.msra.mxu0 0.0
      %314 = vmatprep.subr.mxu0 0.0
      %315 = vmatpush1.msra.mxu0 0.0
      %316 = vmatprep.subr.mxu0 0.0
      %317 = vmatpush1.msra.mxu0 0.0
      %318 = vmatprep.subr.mxu0 0.0
      %319 = vmatpush1.msra.mxu0 0.0
      %320 = vmatprep.subr.mxu0 0.0
      %321 = vmatpush1.msra.mxu0 0.0
      %322 = vmatprep.subr.mxu0 0.0
      %323 = vmatpush1.msra.mxu0 0.0
      %324 = vmatprep.subr.mxu0 0.0
      %325 = vmatpush1.msra.mxu0 0.0
      %326 = vmatprep.subr.mxu0 0.0
      %327 = vmatpush1.msra.mxu0 0.0
      %328 = vmatprep.subr.mxu0 0.0
      %329 = vmatpush1.msra.mxu0 0.0
      %330 = vmatprep.subr.mxu0 0.0
      %331 = vmatpush1.msra.mxu0 0.0
      %332 = vmatprep.mubr.f32.mxu0 0.0
      %333 = vmatmul.mubr.f32.gmra.mrb[0].mxu0 %v266
      %v334 = vpop.f32.mrb[0].mxu0
      %v335 = vadd.f32 %v264, %v334
      %v336 = vpop.f32.mrb[0].mxu0
      %337 = vdwg.mxu0
      %vm338 = vcmask 24576
      %v339 = vsel %vm338, %v335, -inf
      %340 = vmax.xlane.f32.xlu0 %v339
      %v341 = vpop.xlane.xlu0 %340
      %v342 = vsub.f32 %v335, %v341
      %v343 = vmul.f32 %v342, 1.442695
      %v344 = vpow.pop %v343
      %v345 = vsel %vm338, %v344, 0.0
      %346 = vadd.xlane.f32.xlu0 %v345
      %v347 = vpop.xlane.xlu0 %346
      %v348 = vrcp.pop %v347
      %v349 = vmul.f32 %v344, %v348
      %350 = vst.msk [vmem:[#allocation5] sm:$0x1] %vm338, %v349
    $region25: #{tpu_custom_call.1} parent=1 // pred_fallthru
      _
    // Predicated region
    $region26: #{tpu_custom_call.1} parent=1 // pred_check
      _
    $region27: #{tpu_custom_call.1} parent=1 // pred_check_branch
      %352 = sbr.rel (0) target = $region29
    $region28: #{tpu_custom_call.1} parent=1 // pred_region
      %s354 = ssub.s32 16, 16
      %355 = vsyncadd [#allocation6], %s354
      %s357 = sshll.u32 [#allocation5], 4
      %s358 = int_to_ptr.vmem [resolvable:$true] %s357
      %360 = dma.vmem_to_hbm [thread:$0]  %s358, 16, %s4, [#allocation6]
    $region29: #{tpu_custom_call.1} parent=1 // pred_fallthru
      _
    // Predicated region
    $region30: #{tpu_custom_call.1} parent=1 // pred_check
      _
    $region31: #{tpu_custom_call.1} parent=1 // pred_check_branch
      %362 = sbr.rel (0) target = $region33
    $region32: #{tpu_custom_call.1} parent=1 // pred_region
      %s364 = ssub.s32 16, 16
      %365 = vsyncadd [#allocation8], %s364
      %s367 = sshll.u32 [#allocation7], 4
      %s368 = int_to_ptr.vmem [resolvable:$true] %s367
      %370 = dma.vmem_to_hbm [thread:$0]  %s368, 16, %s5, [#allocation8]
    $region33: #{tpu_custom_call.1} parent=1 // pred_fallthru
      _
    // Predicated region
    $region34: #{tpu_custom_call.1} parent=1 // pred_check
      _
    $region35: #{tpu_custom_call.1} parent=1 // pred_check_branch
      %372 = sbr.rel (0) target = $region37
    $region36: #{tpu_custom_call.1} parent=1 // pred_region
      %373 = dma.done [#allocation6], 16
    $region37: #{tpu_custom_call.1} parent=1 // pred_fallthru
      _
    // Predicated region
    $region38: #{tpu_custom_call.1} parent=1 // pred_check
      _
    $region39: #{tpu_custom_call.1} parent=1 // pred_check_branch
      %375 = sbr.rel (0) target = $region41
    $region40: #{tpu_custom_call.1} parent=1 // pred_region
      %376 = dma.done [#allocation8], 16
    $region41: #{tpu_custom_call.1} parent=1 // pred_fallthru
      _
    %377 = vsyncpa [#allocation6], 1
    %378 = vsyncpa [#allocation8], 1

</llo_original>
